<compile_context>
chip_gen: v7x
topology: tpu7x:2x2x1
jax: 0.10.0
libtpu: 0.0.40
codegen_flags: <defaults>
</compile_context>

<pallas_src>
import functools

import jax
import jax.numpy as jnp
from jax import lax
from jax.experimental import pallas as pl
from jax.experimental.pallas import tpu as pltpu

_LANE = 128          # lane width (last-dim alignment for padded layer widths)
_BF16_ROWS = 16      # bf16 packs 16 rows per sublane group


def _round_up(x, m):
    return ((x + m - 1) // m) * m


def _fused_mlp_kernel(x_ref, w0_ref, b0_ref, ws_ref, bs_ref, wl_ref, bl_ref,
                      o_ref, *, n_mid):
    """Whole MLP in one kernel body.

    x_ref : [tm, F]            f32   (unpadded feature dim)
    w0_ref: [F, Hpad]          bf16  (zero-padded output cols)
    b0_ref: [1, Hpad]          f32
    ws_ref: [n_stack, Hpad, Hpad] bf16  (stacked middle layers, zero-padded)
    bs_ref: [n_stack, 1, Hpad] f32
    wl_ref: [Hpad, Opad]       bf16
    bl_ref: [1, Opad]          f32
    o_ref : [tm, Opad]         f32
    Zero padding is exact: padded weight rows/cols and bias entries are 0.
    """
    # First layer + ReLU.
    h = jnp.dot(x_ref[...].astype(jnp.bfloat16), w0_ref[...],
                preferred_element_type=jnp.float32) + b0_ref[...]
    h = jnp.maximum(h, 0.0)

    # Middle hidden layers + ReLU (fori_loop bounds live ranges / vreg pressure).
    def body(l, h):
        hh = jnp.dot(h.astype(jnp.bfloat16), ws_ref[l],
                     preferred_element_type=jnp.float32) + bs_ref[l]
        return jnp.maximum(hh, 0.0)

    h = lax.fori_loop(0, n_mid, body, h)

    # Final (predict) layer, no ReLU.
    out = jnp.dot(h.astype(jnp.bfloat16), wl_ref[...],
                  preferred_element_type=jnp.float32) + bl_ref[...]
    o_ref[...] = out.astype(o_ref.dtype)


def mlp_forward_pallas(x, params, n_output):
    """Fused forward pass. x: [B, n_feature] f32 (unpadded). Returns [B, n_output]."""
    w0, b0 = params["w0"], params["b0"]
    ws, bs = params["ws"], params["bs"]
    wl, bl = params["wl"], params["bl"]
    n_mid = params["n_mid"]

    B, F = x.shape
    Hpad = w0.shape[1]
    Opad = wl.shape[1]

    # Batch tile: >=16 rows (bf16 packing), grow up to 512 to amortize per-step
    # pipeline overhead; pad only rows if B is not a multiple of the tile.
    tm = min(_round_up(B, _BF16_ROWS), 512)
    B_pad = _round_up(B, tm)
    if B_pad != B:
        x = jnp.zeros((B_pad, F), x.dtype).at[:B].set(x)

    grid = (B_pad // tm,)

    flops = 2 * B_pad * (F * Hpad + n_mid * Hpad * Hpad + Hpad * Opad)
    bytes_accessed = (
        B_pad * F * 4
        + sum(int(a.size) * a.dtype.itemsize for a in (w0, b0, ws, bs, wl, bl))
        + B_pad * Opad * 4)

    kernel = functools.partial(_fused_mlp_kernel, n_mid=n_mid)

    out = pl.pallas_call(
        kernel,
        out_shape=jax.ShapeDtypeStruct((B_pad, Opad), jnp.float32),
        grid=grid,
        in_specs=[
            # x is tiled over the batch; feature dim stays at full (unpadded) width.
            pl.BlockSpec((tm, F), lambda i: (i, 0)),
            # Weights/biases: full arrays, same block for every batch tile ->
            # DMA'd once and VMEM-resident across the grid.
            pl.BlockSpec(w0.shape, lambda i: (0, 0)),
            pl.BlockSpec(b0.shape, lambda i: (0, 0)),
            pl.BlockSpec(ws.shape, lambda i: (0, 0, 0)),
            pl.BlockSpec(bs.shape, lambda i: (0, 0, 0)),
            pl.BlockSpec(wl.shape, lambda i: (0, 0)),
            pl.BlockSpec(bl.shape, lambda i: (0, 0)),
        ],
        out_specs=pl.BlockSpec((tm, Opad), lambda i: (i, 0)),
        compiler_params=pltpu.CompilerParams(
            dimension_semantics=("parallel",),   # shards batch tiles across TCs (v7x)
        ),
        cost_estimate=pl.CostEstimate(
            flops=flops, transcendentals=0, bytes_accessed=bytes_accessed),
    )(x, w0, b0, ws, bs, wl, bl)

    # Hand back the true logical shape (drop row + lane padding).
    return out[:B, :n_output]


def init_params(key, n_feature, n_hidden, n_output, w):
    """Synthetic init matching the PyTorch module's shapes/inits.

    Weights: kaiming-normal (fan_in, gain sqrt(2)) like nn.init.kaiming_normal_.
    Biases: uniform(-1/sqrt(fan_in), 1/sqrt(fan_in)) like nn.Linear default.
    Stored transposed ([in, out]), zero-padded to lane-dense widths, weights in
    bf16 for the MXU, biases f32. First layer's input dim is left UNPADDED.
    Middle layers are stacked: ws [w, Hpad, Hpad], bs [w, 1, Hpad].
    """
    Hpad = _round_up(n_hidden, _LANE)
    Opad = _round_up(n_output, _LANE)

    def make_layer(k, d_in, d_out, in_pad, out_pad):
        kw, kb = jax.random.split(k)
        std = (2.0 / d_in) ** 0.5
        W = std * jax.random.normal(kw, (d_in, d_out), dtype=jnp.float32)
        bound = 1.0 / (d_in ** 0.5)
        b = jax.random.uniform(kb, (d_out,), dtype=jnp.float32,
                               minval=-bound, maxval=bound)
        W_pad = (jnp.zeros((in_pad, out_pad), jnp.float32)
                 .at[:d_in, :d_out].set(W).astype(jnp.bfloat16))
        b_pad = jnp.zeros((1, out_pad), jnp.float32).at[0, :d_out].set(b)
        return W_pad, b_pad

    key, k0 = jax.random.split(key)
    w0, b0 = make_layer(k0, n_feature, n_hidden, n_feature, Hpad)

    if w > 0:
        ws_list, bs_list = [], []
        for _ in range(w):
            key, kl = jax.random.split(key)
            Wm, bm = make_layer(kl, n_hidden, n_hidden, Hpad, Hpad)
            ws_list.append(Wm)
            bs_list.append(bm)
        ws = jnp.stack(ws_list)
        bs = jnp.stack(bs_list)
    else:
        # Dummy single slot; never read (fori_loop trip count is 0).
        ws = jnp.zeros((1, Hpad, Hpad), jnp.bfloat16)
        bs = jnp.zeros((1, 1, Hpad), jnp.float32)

    key, kl = jax.random.split(key)
    wl, bl = make_layer(kl, n_hidden, n_output, Hpad, Opad)

    return dict(w0=w0, b0=b0, ws=ws, bs=bs, wl=wl, bl=bl, n_mid=w)


def mlp_forward_ref(x, params, n_output):
    """Pure-JAX reference using the same padded bf16 parameters / casts."""
    h = jnp.dot(x.astype(jnp.bfloat16), params["w0"],
                preferred_element_type=jnp.float32) + params["b0"]
    h = jnp.maximum(h, 0.0)
    for l in range(params["n_mid"]):
        h = jnp.dot(h.astype(jnp.bfloat16), params["ws"][l],
                    preferred_element_type=jnp.float32) + params["bs"][l]
        h = jnp.maximum(h, 0.0)
    out = jnp.dot(h.astype(jnp.bfloat16), params["wl"],
                  preferred_element_type=jnp.float32) + params["bl"]
    return out[:, :n_output]


if __name__ == "__main__":
    # Net(n_feature=16, n_hidden=32, n_output=4, w=3), batch=8
    n_feature, n_hidden, n_output, w = 16, 32, 4, 3
    batch = 8

    key = jax.random.PRNGKey(0)
    key, kx = jax.random.split(key)
    x = jax.random.normal(kx, (batch, n_feature), dtype=jnp.float32)

    params = init_params(key, n_feature, n_hidden, n_output, w)

    out = mlp_forward_pallas(x, params, n_output)
    out = jax.block_until_ready(out)

    assert out.shape == (batch, n_output), out.shape
    assert bool(jnp.all(jnp.isfinite(out)))

    ref = mlp_forward_ref(x, params, n_output)
    assert bool(jnp.allclose(out, ref, atol=2e-2, rtol=2e-2)), \
        float(jnp.max(jnp.abs(out - ref)))

    print("KERNEL_OK")
</pallas_src>

<mosaic_0001>
module attributes {stable_mosaic.version = 11 : i64} {
  func.func @_fused_mlp_kernel(%arg0: i32, %arg1: memref<16x16xf32, #tpu.memory_space<vmem>>, %arg2: memref<16x128xbf16, #tpu.memory_space<vmem>>, %arg3: memref<1x128xf32, #tpu.memory_space<vmem>>, %arg4: memref<3x128x128xbf16, #tpu.memory_space<vmem>>, %arg5: memref<3x1x128xf32, #tpu.memory_space<vmem>>, %arg6: memref<128x128xbf16, #tpu.memory_space<vmem>>, %arg7: memref<1x128xf32, #tpu.memory_space<vmem>>, %arg8: memref<16x128xf32, #tpu.memory_space<vmem>>) attributes {dimension_semantics = [#tpu.dimension_semantics<parallel>], iteration_bounds = array<i64: 1>, scalar_prefetch = 0 : i64, scratch_operands = 0 : i64, tpu.core_type = #tpu.core_type<tc>, window_params = [{transform_indices = @transform_0, window_bounds = array<i64: 16, 16>}, {pipeline_mode = #tpu.pipeline_mode<synchronous>, transform_indices = @transform_1, window_bounds = array<i64: 16, 128>}, {pipeline_mode = #tpu.pipeline_mode<synchronous>, transform_indices = @transform_2, window_bounds = array<i64: 1, 128>}, {pipeline_mode = #tpu.pipeline_mode<synchronous>, transform_indices = @transform_3, window_bounds = array<i64: 3, 128, 128>}, {pipeline_mode = #tpu.pipeline_mode<synchronous>, transform_indices = @transform_4, window_bounds = array<i64: 3, 1, 128>}, {pipeline_mode = #tpu.pipeline_mode<synchronous>, transform_indices = @transform_5, window_bounds = array<i64: 128, 128>}, {pipeline_mode = #tpu.pipeline_mode<synchronous>, transform_indices = @transform_6, window_bounds = array<i64: 1, 128>}, {transform_indices = @transform_7, window_bounds = array<i64: 16, 128>}]} {
    %c0 = arith.constant 0 : index
    %c0_0 = arith.constant 0 : index
    %0 = vector.load %arg1[%c0, %c0_0] : memref<16x16xf32, #tpu.memory_space<vmem>>, vector<16x16xf32>
    %1 = arith.truncf %0 : vector<16x16xf32> to vector<16x16xbf16>
    %c0_1 = arith.constant 0 : index
    %c0_2 = arith.constant 0 : index
    %2 = vector.load %arg2[%c0_1, %c0_2] : memref<16x128xbf16, #tpu.memory_space<vmem>>, vector<16x128xbf16>
    %cst = arith.constant dense<0.000000e+00> : vector<16x128xf32>
    %3 = tpu.matmul %1, %2, %cst {dimension_numbers = #tpu.dot_dimension_numbers<[1], [0], [0], [1], [0, 0, 1, 1], [], []>} : vector<16x16xbf16>, vector<16x128xbf16>, vector<16x128xf32> -> vector<16x128xf32>
    %c0_3 = arith.constant 0 : index
    %c0_4 = arith.constant 0 : index
    %4 = vector.load %arg3[%c0_3, %c0_4] : memref<1x128xf32, #tpu.memory_space<vmem>>, vector<1x128xf32>
    %5 = vector.broadcast %4 : vector<1x128xf32> to vector<16x128xf32>
    %6 = arith.addf %3, %5 : vector<16x128xf32>
    %cst_5 = arith.constant 0.000000e+00 : f32
    %7 = vector.broadcast %cst_5 : f32 to vector<16x128xf32>
    %8 = arith.maximumf %6, %7 : vector<16x128xf32>
    %c0_i32 = arith.constant 0 : i32
    %c3_i32 = arith.constant 3 : i32
    %9 = arith.addi %c0_i32, %c3_i32 : i32
    %c1_i32 = arith.constant 1 : i32
    %10 = scf.for %arg9 = %c0_i32 to %9 step %c1_i32 iter_args(%arg10 = %8) -> (vector<16x128xf32>)  : i32 {
      %18 = arith.truncf %arg10 : vector<16x128xf32> to vector<16x128xbf16>
      %19 = arith.index_cast %arg9 : i32 to index
      %c0_14 = arith.constant 0 : index
      %c0_15 = arith.constant 0 : index
      %20 = vector.load %arg4[%19, %c0_14, %c0_15] : memref<3x128x128xbf16, #tpu.memory_space<vmem>>, vector<1x128x128xbf16>
      %21 = vector.shape_cast %20 : vector<1x128x128xbf16> to vector<128x128xbf16>
      %cst_16 = arith.constant dense<0.000000e+00> : vector<16x128xf32>
      %22 = tpu.matmul %18, %21, %cst_16 {dimension_numbers = #tpu.dot_dimension_numbers<[1], [0], [0], [1], [0, 0, 1, 1], [], []>} : vector<16x128xbf16>, vector<128x128xbf16>, vector<16x128xf32> -> vector<16x128xf32>
      %23 = arith.index_cast %arg9 : i32 to index
      %c0_17 = arith.constant 0 : index
      %c0_18 = arith.constant 0 : index
      %24 = vector.load %arg5[%23, %c0_17, %c0_18] : memref<3x1x128xf32, #tpu.memory_space<vmem>>, vector<1x1x128xf32>
      %25 = vector.shape_cast %24 : vector<1x1x128xf32> to vector<1x128xf32>
      %26 = vector.broadcast %25 : vector<1x128xf32> to vector<16x128xf32>
      %27 = arith.addf %22, %26 : vector<16x128xf32>
      %cst_19 = arith.constant 0.000000e+00 : f32
      %28 = vector.broadcast %cst_19 : f32 to vector<16x128xf32>
      %29 = arith.maximumf %27, %28 : vector<16x128xf32>
      scf.yield %29 : vector<16x128xf32>
    }
    %c3_i32_6 = arith.constant 3 : i32
    %11 = arith.truncf %10 : vector<16x128xf32> to vector<16x128xbf16>
    %c0_7 = arith.constant 0 : index
    %c0_8 = arith.constant 0 : index
    %12 = vector.load %arg6[%c0_7, %c0_8] : memref<128x128xbf16, #tpu.memory_space<vmem>>, vector<128x128xbf16>
    %cst_9 = arith.constant dense<0.000000e+00> : vector<16x128xf32>
    %13 = tpu.matmul %11, %12, %cst_9 {dimension_numbers = #tpu.dot_dimension_numbers<[1], [0], [0], [1], [0, 0, 1, 1], [], []>} : vector<16x128xbf16>, vector<128x128xbf16>, vector<16x128xf32> -> vector<16x128xf32>
    %c0_10 = arith.constant 0 : index
    %c0_11 = arith.constant 0 : index
    %14 = vector.load %arg7[%c0_10, %c0_11] : memref<1x128xf32, #tpu.memory_space<vmem>>, vector<1x128xf32>
    %15 = vector.broadcast %14 : vector<1x128xf32> to vector<16x128xf32>
    %16 = arith.addf %13, %15 : vector<16x128xf32>
    %c0_12 = arith.constant 0 : index
    %c0_13 = arith.constant 0 : index
    %17 = vector.load %arg8[%c0_12, %c0_13] : memref<16x128xf32, #tpu.memory_space<vmem>>, vector<16x128xf32>
    tpu.vector_store %arg8[%c0_12, %c0_13], %16 {strides = array<i32>} : memref<16x128xf32, #tpu.memory_space<vmem>>, vector<16x128xf32>,
    return
  }
  func.func @transform_0(%arg0: i32) -> (i32, i32) {
    %c0_i32 = arith.constant 0 : i32
    %c0_i32_0 = arith.constant 0 : i32
    return %arg0, %c0_i32 : i32, i32
  }
  func.func @transform_1(%arg0: i32) -> (i32, i32) {
    %c0_i32 = arith.constant 0 : i32
    %c0_i32_0 = arith.constant 0 : i32
    %c0_i32_1 = arith.constant 0 : i32
    return %c0_i32, %c0_i32_0 : i32, i32
  }
  func.func @transform_2(%arg0: i32) -> (i32, i32) {
    %c0_i32 = arith.constant 0 : i32
    %c0_i32_0 = arith.constant 0 : i32
    %c0_i32_1 = arith.constant 0 : i32
    return %c0_i32, %c0_i32_0 : i32, i32
  }
  func.func @transform_3(%arg0: i32) -> (i32, i32, i32) {
    %c0_i32 = arith.constant 0 : i32
    %c0_i32_0 = arith.constant 0 : i32
    %c0_i32_1 = arith.constant 0 : i32
    %c0_i32_2 = arith.constant 0 : i32
    return %c0_i32, %c0_i32_0, %c0_i32_1 : i32, i32, i32
  }
  func.func @transform_4(%arg0: i32) -> (i32, i32, i32) {
    %c0_i32 = arith.constant 0 : i32
    %c0_i32_0 = arith.constant 0 : i32
    %c0_i32_1 = arith.constant 0 : i32
    %c0_i32_2 = arith.constant 0 : i32
    return %c0_i32, %c0_i32_0, %c0_i32_1 : i32, i32, i32
  }
  func.func @transform_5(%arg0: i32) -> (i32, i32) {
    %c0_i32 = arith.constant 0 : i32
    %c0_i32_0 = arith.constant 0 : i32
    %c0_i32_1 = arith.constant 0 : i32
    return %c0_i32, %c0_i32_0 : i32, i32
  }
  func.func @transform_6(%arg0: i32) -> (i32, i32) {
    %c0_i32 = arith.constant 0 : i32
    %c0_i32_0 = arith.constant 0 : i32
    %c0_i32_1 = arith.constant 0 : i32
    return %c0_i32, %c0_i32_0 : i32, i32
  }
  func.func @transform_7(%arg0: i32) -> (i32, i32) {
    %c0_i32 = arith.constant 0 : i32
    %c0_i32_0 = arith.constant 0 : i32
    return %arg0, %c0_i32 : i32, i32
  }
}

</mosaic_0001>

<llo_original>
// kernel: tpu_custom_call.1
$region0: #{tpu_custom_call.1}
  #allocation0 [shape = 'u32[]', space=smem, size = 0x4, offset = 0x4, fixed_abs, tag = 'smem constant byte address 0x4 - core index']
  #allocation1 [shape = 'u32[144,128]{1,0:T(1,128)}', space=vmem, size = 0x12000, scoped, tag = 'internal scratch']
  %s0 = inlined_call_operand.hbm [shape: f32[16,16], index: 0, kind: input, shape index: {}]
  %s1 = inlined_call_operand.hbm [shape: bf16[16,128], index: 1, kind: input, shape index: {}]
  %s2 = inlined_call_operand.vmem [shape: f32[1,128], index: 2, kind: input, shape index: {}]
  %s3 = inlined_call_operand.hbm [shape: bf16[3,128,128], index: 3, kind: input, shape index: {}]
  %s4 = inlined_call_operand.vmem [shape: f32[3,1,128], index: 4, kind: input, shape index: {}]
  %s5 = inlined_call_operand.hbm [shape: bf16[128,128], index: 5, kind: input, shape index: {}]
  %s6 = inlined_call_operand.vmem [shape: f32[1,128], index: 6, kind: input, shape index: {}]
  %s7 = inlined_call_operand.hbm [shape: f32[16,128], index: 7, kind: output, shape index: {}]
  %s8 = sld [smem:[#allocation0]]
  $region61: #{tpu_custom_call.1} parent=0
    _
  %s10 = ssub.s32 1, %s8
  %s11 = scalar_select 0, %s10, %s8
  $region1: #{tpu_custom_call.1} parent=0
    #allocation2 [shape = 'u8[8192]{0}', space=vmem, size = 0x2000, scoped, tag = 'input window, operand 0, single buffered']
    #allocation3 [shape = 's32[1]{0}', space=sflag, size = 0x4, scoped, tag = 'scoped memory for tpu_custom_call.1']
    #allocation4 [shape = 's32[1]{0}', space=sflag, size = 0x4, scoped, tag = 'scoped memory for tpu_custom_call.1']
    #allocation5 [shape = 'u8[4096]{0}', space=vmem, size = 0x1000, scoped, tag = 'input window, operand 1, single buffered']
    #allocation6 [shape = 's32[1]{0}', space=sflag, size = 0x4, scoped, tag = 'scoped memory for tpu_custom_call.1']
    #allocation7 [shape = 'u8[98304]{0}', space=vmem, size = 0x18000, scoped, tag = 'input window, operand 3, single buffered']
    #allocation8 [shape = 'u8[32768]{0}', space=vmem, size = 0x8000, scoped, tag = 'input window, operand 5, single buffered']
    #allocation9 [shape = 's32[1]{0}', space=sflag, size = 0x4, scoped, tag = 'scoped memory for tpu_custom_call.1']
    #allocation10 [shape = 'u8[8192]{0}', space=vmem, size = 0x2000, scoped, tag = 'output window, operand 0, single buffered']
    %12 = vsyncpa [#allocation3], 0
    %13 = vsyncpa [#allocation6], 0
    %14 = vsyncpa [#allocation9], 0
    %15 = vsyncpa [#allocation4], 0
    // Predicated region
    $region2: #{tpu_custom_call.1} parent=1 // pred_check
      _
    $region3: #{tpu_custom_call.1} parent=1 // pred_check_branch
      %17 = sbr.rel (0) target = $region5
    $region4: #{tpu_custom_call.1} parent=1 // pred_region
      %s19 = ssub.s32 256, 256
      %20 = vsyncadd [#allocation3], %s19
      %s21 = sshll.u32 [#allocation2], 4
      %s22 = int_to_ptr.vmem [resolvable:$true] %s21
      %27 = dma.hbm_to_vmem [thread:$0]  %s0, 256, %s22, [#allocation3], 128, 128, 8
    $region5: #{tpu_custom_call.1} parent=1 // pred_fallthru
      _
    // Predicated region
    $region6: #{tpu_custom_call.1} parent=1 // pred_check
      _
    $region7: #{tpu_custom_call.1} parent=1 // pred_check_branch
      %29 = sbr.rel (0) target = $region9
    $region8: #{tpu_custom_call.1} parent=1 // pred_region
      %s31 = ssub.s32 128, 128
      %32 = vsyncadd [#allocation6], %s31
      %s33 = sshll.u32 [#allocation5], 4
      %s34 = int_to_ptr.vmem [resolvable:$true] %s33
      %39 = dma.hbm_to_vmem [thread:$0]  %s1, 128, %s34, [#allocation6], 64, 64, 4
    $region9: #{tpu_custom_call.1} parent=1 // pred_fallthru
      _
    // Predicated region
    $region10: #{tpu_custom_call.1} parent=1 // pred_check
      _
    $region11: #{tpu_custom_call.1} parent=1 // pred_check_branch
      %41 = sbr.rel (0) target = $region13
    $region12: #{tpu_custom_call.1} parent=1 // pred_region
      _
    $region13: #{tpu_custom_call.1} parent=1 // pred_fallthru
      _
    // Predicated region
    $region14: #{tpu_custom_call.1} parent=1 // pred_check
      _
    $region15: #{tpu_custom_call.1} parent=1 // pred_check_branch
      %43 = sbr.rel (0) target = $region17
    $region16: #{tpu_custom_call.1} parent=1 // pred_region
      %s45 = ssub.s32 3072, 3072
      %46 = vsyncadd [#allocation6], %s45
      %s47 = sshll.u32 [#allocation7], 4
      %s48 = int_to_ptr.vmem [resolvable:$true] %s47
      %53 = dma.hbm_to_vmem [thread:$0]  %s3, 3072, %s48, [#allocation6], 64, 64, 4
    $region17: #{tpu_custom_call.1} parent=1 // pred_fallthru
      _
    // Predicated region
    $region18: #{tpu_custom_call.1} parent=1 // pred_check
      _
    $region19: #{tpu_custom_call.1} parent=1 // pred_check_branch
      %55 = sbr.rel (0) target = $region21
    $region20: #{tpu_custom_call.1} parent=1 // pred_region
      _
    $region21: #{tpu_custom_call.1} parent=1 // pred_fallthru
      _
    // Predicated region
    $region22: #{tpu_custom_call.1} parent=1 // pred_check
      _
    $region23: #{tpu_custom_call.1} parent=1 // pred_check_branch
      %57 = sbr.rel (0) target = $region25
    $region24: #{tpu_custom_call.1} parent=1 // pred_region
      %s59 = ssub.s32 1024, 1024
      %60 = vsyncadd [#allocation9], %s59
      %s61 = sshll.u32 [#allocation8], 4
      %s62 = int_to_ptr.vmem [resolvable:$true] %s61
      %67 = dma.hbm_to_vmem [thread:$0]  %s5, 1024, %s62, [#allocation9], 64, 64, 4
    $region25: #{tpu_custom_call.1} parent=1 // pred_fallthru
      _
    // Predicated region
    $region26: #{tpu_custom_call.1} parent=1 // pred_check
      _
    $region27: #{tpu_custom_call.1} parent=1 // pred_check_branch
      %69 = sbr.rel (0) target = $region29
    $region28: #{tpu_custom_call.1} parent=1 // pred_region
      _
    $region29: #{tpu_custom_call.1} parent=1 // pred_fallthru
      _
    // Predicated region
    $region30: #{tpu_custom_call.1} parent=1 // pred_check
      _
    $region31: #{tpu_custom_call.1} parent=1 // pred_check_branch
      %71 = sbr.rel (0) target = $region33
    $region32: #{tpu_custom_call.1} parent=1 // pred_region
      %72 = dma.done [#allocation3], 256
    $region33: #{tpu_custom_call.1} parent=1 // pred_fallthru
      _
    // Predicated region
    $region34: #{tpu_custom_call.1} parent=1 // pred_check
      _
    $region35: #{tpu_custom_call.1} parent=1 // pred_check_branch
      %74 = sbr.rel (0) target = $region37
    $region36: #{tpu_custom_call.1} parent=1 // pred_region
      %75 = dma.done [#allocation6], 128
    $region37: #{tpu_custom_call.1} parent=1 // pred_fallthru
      _
    // Predicated region
    $region38: #{tpu_custom_call.1} parent=1 // pred_check
      _
    $region39: #{tpu_custom_call.1} parent=1 // pred_check_branch
      %77 = sbr.rel (0) target = $region41
    $region40: #{tpu_custom_call.1} parent=1 // pred_region
      %78 = dma.done [#allocation6], 3072
    $region41: #{tpu_custom_call.1} parent=1 // pred_fallthru
      _
    // Predicated region
    $region42: #{tpu_custom_call.1} parent=1 // pred_check
      _
    $region43: #{tpu_custom_call.1} parent=1 // pred_check_branch
      %80 = sbr.rel (0) target = $region45
    $region44: #{tpu_custom_call.1} parent=1 // pred_region
      %81 = dma.done [#allocation9], 1024
    $region45: #{tpu_custom_call.1} parent=1 // pred_fallthru
      _
    %v83 = vld [vmem:[#allocation2] sm:$0xff]
    %v84 = vld [vmem:[#allocation2 + $0x8] sm:$0xff]
    %v85 = vpack.c.bf16 %v84, %v83
    %v86 = vld [vmem:[#allocation5] sm:$0xf]
    %v87 = vld [vmem:[#allocation5 + $0x4] sm:$0xf]
    %v88 = vld [vmem:[%s2] sm:$0x1]
    %v90 = vlaneseq
    %v91 = vshrl.u32 %v90, 7
    %v92 = vsub.s32 0, %v91
    %v93 = vrot.slane %v88, %v92
    %v97 = vunpack.c.l.b16 %v86
    %v98 = vunpack.c.l.b16 %v87
    %v99 = vpack.c.b16 %v98, %v97
    %vm101 = vcmask 130048
    %v103 = vsel %vm101, %v85, 0
    %105 = vmatprep.subr.bf16.mxu0 0
    %106 = vmatpush1.bf16.msra.mxu0 %v99
    %107 = vmatprep.subr.bf16.mxu0 0
    %108 = vmatpush1.bf16.msra.mxu0 0
    %109 = vmatprep.subr.bf16.mxu0 0
    %110 = vmatpush1.bf16.msra.mxu0 0
    %111 = vmatprep.subr.bf16.mxu0 0
    %112 = vmatpush1.bf16.msra.mxu0 0
    %113 = vmatprep.subr.bf16.mxu0 0
    %114 = vmatpush1.bf16.msra.mxu0 0
    %115 = vmatprep.subr.bf16.mxu0 0
    %116 = vmatpush1.bf16.msra.mxu0 0
    %117 = vmatprep.subr.bf16.mxu0 0
    %118 = vmatpush1.bf16.msra.mxu0 0
    %119 = vmatprep.subr.bf16.mxu0 0
    %120 = vmatpush1.bf16.msra.mxu0 0
    %121 = vmatprep.subr.bf16.mxu0 0
    %122 = vmatpush1.bf16.msra.mxu0 0
    %123 = vmatprep.subr.bf16.mxu0 0
    %124 = vmatpush1.bf16.msra.mxu0 0
    %125 = vmatprep.subr.bf16.mxu0 0
    %126 = vmatpush1.bf16.msra.mxu0 0
    %127 = vmatprep.subr.bf16.mxu0 0
    %128 = vmatpush1.bf16.msra.mxu0 0
    %129 = vmatprep.subr.bf16.mxu0 0
    %130 = vmatpush1.bf16.msra.mxu0 0
    %131 = vmatprep.subr.bf16.mxu0 0
    %132 = vmatpush1.bf16.msra.mxu0 0
    %133 = vmatprep.subr.bf16.mxu0 0
    %134 = vmatpush1.bf16.msra.mxu0 0
    %135 = vmatprep.subr.bf16.mxu0 0
    %136 = vmatpush1.bf16.msra.mxu0 0
    %137 = vmatprep.mubr.bf16.mxu0 0
    %138 = vmatmul.mubr.bf16.gmra.mrb[0].mxu0 %v103
    %v139 = vpop.f32.mrb[0].mxu0
    %v140 = vadd.f32 %v93, %v139
    %v141 = vpop.f32.mrb[0].mxu0
    %v142 = vpop.f32.mrb[0].mxu0
    %v143 = vadd.f32 %v93, %v142
    %v144 = vpop.f32.mrb[0].mxu0
    %145 = vdwg.mxu0
    %v146 = vmax.f32 %v140, 0.0
    %v147 = vmax.f32 %v143, 0.0
    loop: start=0, step=1, limit=3
    $region46: #{tpu_custom_call.1} parent=1 // loop_pre_header
      _
    $region47: #{tpu_custom_call.1} parent=1 // loop_header
      %s149 = sphi 0, %s153
      %p150 = scmp.ge.s32.totalorder %s149, 3
      %v154 = vphi %v146, %v273
      %v155 = vphi %v147, %v274
    $region48: #{tpu_custom_call.1} parent=1 // loop_header_branch
      %152 = sbr.rel (%p150) target = $region52
    $region49: #{tpu_custom_call.1} parent=1 // loop_body
      %v156 = vpack.c.bf16 %v155, %v154
      %s157 = smul.u32 %s149, 16
      %s158 = smul.addr %s157, 4
      %s159 = scalar_lea.vmem [#allocation7], %s158
      %v160 = vld [vmem:[%s159] sm:$0xf]
      %v161 = vld [vmem:[%s159 + $0x4] sm:$0xf]
      %v162 = vld [vmem:[%s159 + $0x8] sm:$0xf]
      %v163 = vld [vmem:[%s159 + $0xc] sm:$0xf]
      %v164 = vld [vmem:[%s159 + $0x10] sm:$0xf]
      %v165 = vld [vmem:[%s159 + $0x14] sm:$0xf]
      %v166 = vld [vmem:[%s159 + $0x18] sm:$0xf]
      %v167 = vld [vmem:[%s159 + $0x1c] sm:$0xf]
      %v168 = vld [vmem:[%s159 + $0x20] sm:$0xf]
      %v169 = vld [vmem:[%s159 + $0x24] sm:$0xf]
      %v170 = vld [vmem:[%s159 + $0x28] sm:$0xf]
      %v171 = vld [vmem:[%s159 + $0x2c] sm:$0xf]
      %v172 = vld [vmem:[%s159 + $0x30] sm:$0xf]
      %v173 = vld [vmem:[%s159 + $0x34] sm:$0xf]
      %v174 = vld [vmem:[%s159 + $0x38] sm:$0xf]
      %v175 = vld [vmem:[%s159 + $0x3c] sm:$0xf]
      %s176 = scalar_lea.vmem %s4, %s149
      %v177 = vld [vmem:[%s176] sm:$0x1]
      %v179 = vlaneseq
      %v180 = vshrl.u32 %v179, 7
      %v181 = vsub.s32 0, %v180
      %v182 = vrot.slane %v177, %v181
      %v200 = vunpack.c.l.b16 %v160
      %v201 = vunpack.c.l.b16 %v161
      %v202 = vunpack.c.l.b16 %v162
      %v203 = vunpack.c.l.b16 %v163
      %v204 = vunpack.c.l.b16 %v164
      %v205 = vunpack.c.l.b16 %v165
      %v206 = vunpack.c.l.b16 %v166
      %v207 = vunpack.c.l.b16 %v167
      %v208 = vunpack.c.l.b16 %v168
      %v209 = vunpack.c.l.b16 %v169
      %v210 = vunpack.c.l.b16 %v170
      %v211 = vunpack.c.l.b16 %v171
      %v212 = vunpack.c.l.b16 %v172
      %v213 = vunpack.c.l.b16 %v173
      %v214 = vunpack.c.l.b16 %v174
      %v215 = vunpack.c.l.b16 %v175
      %v216 = vpack.c.b16 %v201, %v200
      %v217 = vpack.c.b16 %v203, %v202
      %v218 = vpack.c.b16 %v205, %v204
      %v219 = vpack.c.b16 %v207, %v206
      %v220 = vpack.c.b16 %v209, %v208
      %v221 = vpack.c.b16 %v211, %v210
      %v222 = vpack.c.b16 %v213, %v212
      %v223 = vpack.c.b16 %v215, %v214
      %232 = vmatprep.subr.bf16.mxu0 0
      %233 = vmatpush1.bf16.msra.mxu0 %v216
      %234 = vmatprep.subr.bf16.mxu0 0
      %235 = vmatpush1.bf16.msra.mxu0 %v217
      %236 = vmatprep.subr.bf16.mxu0 0
      %237 = vmatpush1.bf16.msra.mxu0 %v218
      %238 = vmatprep.subr.bf16.mxu0 0
      %239 = vmatpush1.bf16.msra.mxu0 %v219
      %240 = vmatprep.subr.bf16.mxu0 0
      %241 = vmatpush1.bf16.msra.mxu0 %v220
      %242 = vmatprep.subr.bf16.mxu0 0
      %243 = vmatpush1.bf16.msra.mxu0 %v221
      %244 = vmatprep.subr.bf16.mxu0 0
      %245 = vmatpush1.bf16.msra.mxu0 %v222
      %246 = vmatprep.subr.bf16.mxu0 0
      %247 = vmatpush1.bf16.msra.mxu0 %v223
      %248 = vmatprep.subr.bf16.mxu0 0
      %249 = vmatpush1.bf16.msra.mxu0 0
      %250 = vmatprep.subr.bf16.mxu0 0
      %251 = vmatpush1.bf16.msra.mxu0 0
      %252 = vmatprep.subr.bf16.mxu0 0
      %253 = vmatpush1.bf16.msra.mxu0 0
      %254 = vmatprep.subr.bf16.mxu0 0
      %255 = vmatpush1.bf16.msra.mxu0 0
      %256 = vmatprep.subr.bf16.mxu0 0
      %257 = vmatpush1.bf16.msra.mxu0 0
      %258 = vmatprep.subr.bf16.mxu0 0
      %259 = vmatpush1.bf16.msra.mxu0 0
      %260 = vmatprep.subr.bf16.mxu0 0
      %261 = vmatpush1.bf16.msra.mxu0 0
      %262 = vmatprep.subr.bf16.mxu0 0
      %263 = vmatpush1.bf16.msra.mxu0 0
      %264 = vmatprep.mubr.bf16.mxu0 0
      %265 = vmatmul.mubr.bf16.gmra.mrb[0].mxu0 %v156
      %v266 = vpop.f32.mrb[0].mxu0
      %v267 = vadd.f32 %v182, %v266
      %v268 = vpop.f32.mrb[0].mxu0
      %v269 = vpop.f32.mrb[0].mxu0
      %v270 = vadd.f32 %v182, %v269
      %v271 = vpop.f32.mrb[0].mxu0
      %272 = vdwg.mxu0
      %v273 = vmax.f32 %v267, 0.0
      %v274 = vmax.f32 %v270, 0.0
    $region50: #{tpu_custom_call.1} parent=1 // loop_footer
      %s153 = sadd.s32 1, %s149
    $region51: #{tpu_custom_call.1} parent=1 // loop_footer_branch
      %148 = sbr.rel target = $region47
    $region52: #{tpu_custom_call.1} parent=1 // loop_exit
      _
    %v275 = vpack.c.bf16 %v155, %v154
    %v276 = vld [vmem:[#allocation8] sm:$0xf]
    %v277 = vld [vmem:[#allocation8 + $0x4] sm:$0xf]
    %v278 = vld [vmem:[#allocation8 + $0x8] sm:$0xf]
    %v279 = vld [vmem:[#allocation8 + $0xc] sm:$0xf]
    %v280 = vld [vmem:[#allocation8 + $0x10] sm:$0xf]
    %v281 = vld [vmem:[#allocation8 + $0x14] sm:$0xf]
    %v282 = vld [vmem:[#allocation8 + $0x18] sm:$0xf]
    %v283 = vld [vmem:[#allocation8 + $0x1c] sm:$0xf]
    %v284 = vld [vmem:[#allocation8 + $0x20] sm:$0xf]
    %v285 = vld [vmem:[#allocation8 + $0x24] sm:$0xf]
    %v286 = vld [vmem:[#allocation8 + $0x28] sm:$0xf]
    %v287 = vld [vmem:[#allocation8 + $0x2c] sm:$0xf]
    %v288 = vld [vmem:[#allocation8 + $0x30] sm:$0xf]
    %v289 = vld [vmem:[#allocation8 + $0x34] sm:$0xf]
    %v290 = vld [vmem:[#allocation8 + $0x38] sm:$0xf]
    %v291 = vld [vmem:[#allocation8 + $0x3c] sm:$0xf]
    %v292 = vld [vmem:[%s6] sm:$0x1]
    %v294 = vlaneseq
    %v295 = vshrl.u32 %v294, 7
    %v296 = vsub.s32 0, %v295
    %v297 = vrot.slane %v292, %v296
    %v315 = vunpack.c.l.b16 %v276
    %v316 = vunpack.c.l.b16 %v277
    %v317 = vunpack.c.l.b16 %v278
    %v318 = vunpack.c.l.b16 %v279
    %v319 = vunpack.c.l.b16 %v280
    %v320 = vunpack.c.l.b16 %v281
    %v321 = vunpack.c.l.b16 %v282
    %v322 = vunpack.c.l.b16 %v283
    %v323 = vunpack.c.l.b16 %v284
    %v324 = vunpack.c.l.b16 %v285
    %v325 = vunpack.c.l.b16 %v286
    %v326 = vunpack.c.l.b16 %v287
    %v327 = vunpack.c.l.b16 %v288
    %v328 = vunpack.c.l.b16 %v289
    %v329 = vunpack.c.l.b16 %v290
    %v330 = vunpack.c.l.b16 %v291
    %v331 = vpack.c.b16 %v316, %v315
    %v332 = vpack.c.b16 %v318, %v317
    %v333 = vpack.c.b16 %v320, %v319
    %v334 = vpack.c.b16 %v322, %v321
    %v335 = vpack.c.b16 %v324, %v323
    %v336 = vpack.c.b16 %v326, %v325
    %v337 = vpack.c.b16 %v328, %v327
    %v338 = vpack.c.b16 %v330, %v329
    %347 = vmatprep.subr.bf16.mxu0 0
    %348 = vmatpush1.bf16.msra.mxu0 %v331
    %349 = vmatprep.subr.bf16.mxu0 0
    %350 = vmatpush1.bf16.msra.mxu0 %v332
    %351 = vmatprep.subr.bf16.mxu0 0
    %352 = vmatpush1.bf16.msra.mxu0 %v333
    %353 = vmatprep.subr.bf16.mxu0 0
    %354 = vmatpush1.bf16.msra.mxu0 %v334
    %355 = vmatprep.subr.bf16.mxu0 0
    %356 = vmatpush1.bf16.msra.mxu0 %v335
    %357 = vmatprep.subr.bf16.mxu0 0
    %358 = vmatpush1.bf16.msra.mxu0 %v336
    %359 = vmatprep.subr.bf16.mxu0 0
    %360 = vmatpush1.bf16.msra.mxu0 %v337
    %361 = vmatprep.subr.bf16.mxu0 0
    %362 = vmatpush1.bf16.msra.mxu0 %v338
    %363 = vmatprep.subr.bf16.mxu0 0
    %364 = vmatpush1.bf16.msra.mxu0 0
    %365 = vmatprep.subr.bf16.mxu0 0
    %366 = vmatpush1.bf16.msra.mxu0 0
    %367 = vmatprep.subr.bf16.mxu0 0
    %368 = vmatpush1.bf16.msra.mxu0 0
    %369 = vmatprep.subr.bf16.mxu0 0
    %370 = vmatpush1.bf16.msra.mxu0 0
    %371 = vmatprep.subr.bf16.mxu0 0
    %372 = vmatpush1.bf16.msra.mxu0 0
    %373 = vmatprep.subr.bf16.mxu0 0
    %374 = vmatpush1.bf16.msra.mxu0 0
    %375 = vmatprep.subr.bf16.mxu0 0
    %376 = vmatpush1.bf16.msra.mxu0 0
    %377 = vmatprep.subr.bf16.mxu0 0
    %378 = vmatpush1.bf16.msra.mxu0 0
    %379 = vmatprep.mubr.bf16.mxu0 0
    %380 = vmatmul.mubr.bf16.gmra.mrb[0].mxu0 %v275
    %v381 = vpop.f32.mrb[0].mxu0
    %v382 = vadd.f32 %v297, %v381
    %v383 = vpop.f32.mrb[0].mxu0
    %v384 = vpop.f32.mrb[0].mxu0
    %v385 = vadd.f32 %v297, %v384
    %v386 = vpop.f32.mrb[0].mxu0
    %387 = vdwg.mxu0
    %388 = vst [vmem:[#allocation10] sm:$0xff] %v382
    %389 = vst [vmem:[#allocation10 + $0x8] sm:$0xff] %v385
    // Predicated region
    $region53: #{tpu_custom_call.1} parent=1 // pred_check
      _
    $region54: #{tpu_custom_call.1} parent=1 // pred_check_branch
      %391 = sbr.rel (0) target = $region56
    $region55: #{tpu_custom_call.1} parent=1 // pred_region
      %s393 = ssub.s32 256, 256
      %394 = vsyncadd [#allocation4], %s393
      %s395 = sshll.u32 [#allocation10], 4
      %s396 = int_to_ptr.vmem [resolvable:$true] %s395
      %401 = dma.vmem_to_hbm [thread:$0]  %s396, 256, %s7, [#allocation4], 128, 128, 8
    $region56: #{tpu_custom_call.1} parent=1 // pred_fallthru
      _
    // Predicated region
    $region57: #{tpu_custom_call.1} parent=1 // pred_check
      _
    $region58: #{tpu_custom_call.1} parent=1 // pred_check_branch
      %403 = sbr.rel (0) target = $region60
    $region59: #{tpu_custom_call.1} parent=1 // pred_region
      %404 = dma.done [#allocation4], 256
    $region60: #{tpu_custom_call.1} parent=1 // pred_fallthru
      _
    %405 = vsyncpa [#allocation3], 1
    %406 = vsyncpa [#allocation6], 1
    %407 = vsyncpa [#allocation9], 1
    %408 = vsyncpa [#allocation4], 1

</llo_original>
